<compile_context>
chip_gen: v6e
topology: v6e:2x2x1
jax: 0.10.0
libtpu: 0.0.40
codegen_flags: <defaults>
</compile_context>

<pallas_src>
import jax
import jax.numpy as jnp
from jax.experimental import pallas as pl
from jax.experimental.pallas import tpu as pltpu

_LANE = 128
_SUBLANE = 8


def _identity_kernel(x_ref, o_ref):
    # Pure pass-through: one full-tile load + store.  Lane width is a multiple
    # of 128 so stores are unmasked `vst`; the kernel is purely DMA-bound.
    o_ref[...] = x_ref[...]


def identity(x: jax.Array) -> jax.Array:
    """Pallas implementation of Identity.forward (returns x unchanged).

    NOTE: the truly optimal Identity is `return x` (zero HBM traffic); the
    Pallas path below is the minimal-cost copy: exactly one read + one write
    of the tensor, no extra pad/slice passes on the aligned fast path.
    """
    orig_shape = x.shape
    orig_dtype = x.dtype
    n = x.size

    # Degenerate case: nothing to copy (avoids a zero-size grid / div-by-zero).
    if n == 0:
        return x

    aligned = (n % (_SUBLANE * _LANE) == 0)
    if aligned:
        # Fast path: flat size already a multiple of 8*128 -> reshape directly
        # into a lane-dense 2-D view.  No padding, no trailing slice.
        rows = n // _LANE
        x2d = x.reshape(rows, _LANE)
    else:
        # Rare path: bounded zero-pad (< 1024 elements) to an (8,128)-tileable
        # 2-D view; sliced back off at the end.
        flat = x.reshape(-1)
        rows = pl.cdiv(n, _LANE)
        rows = pl.cdiv(rows, _SUBLANE) * _SUBLANE
        pad = rows * _LANE - n
        x2d = jnp.pad(flat, (0, pad)).reshape(rows, _LANE)

    # Block sizing: target ~4 MiB lane-dense blocks.  With input and output
    # each double-buffered that is ~16 MiB of VMEM -- safe inside v7x's 64 MiB
    # physical / 32 MiB scoped limit, and well under v5e/v6e's 128 MiB.
    itemsize = x.dtype.itemsize
    target_block_bytes = 4 * 1024 * 1024
    target_rows = max(_SUBLANE, target_block_bytes // (_LANE * itemsize))
    target_rows = (target_rows // _SUBLANE) * _SUBLANE
    tile_rows = min(rows, target_rows)

    # cdiv grid: a partial boundary block is handled by Pallas, so there is no
    # pathological "divide tile_rows down to 8" fallback for awkward shapes.
    grid = (pl.cdiv(rows, tile_rows),)

    out2d = pl.pallas_call(
        _identity_kernel,
        out_shape=jax.ShapeDtypeStruct((rows, _LANE), orig_dtype),
        grid_spec=pltpu.PrefetchScalarGridSpec(
            num_scalar_prefetch=0,
            grid=grid,
            in_specs=[pl.BlockSpec((tile_rows, _LANE), lambda i: (i, 0))],
            out_specs=pl.BlockSpec((tile_rows, _LANE), lambda i: (i, 0)),
        ),
        compiler_params=pltpu.CompilerParams(
            # Single grid axis is independent -> shards across the 2 TCs on v7x.
            dimension_semantics=("parallel",),
            # Explicit scoped-VMEM budget: fits v7x, lifts v5e's 16 MiB default.
            vmem_limit_bytes=32 << 20,
        ),
    )(x2d)

    if aligned:
        return out2d.reshape(orig_shape)
    return out2d.reshape(-1)[:n].reshape(orig_shape)


if __name__ == "__main__":
    key = jax.random.PRNGKey(0)

    # Small NCHW input consistent with a CLIP-embedding pipeline tensor.
    x = jax.random.normal(key, (2, 4, 16, 16), dtype=jnp.float32)
    y = identity(x)
    jax.block_until_ready(y)
    assert y.shape == x.shape
    assert y.dtype == x.dtype
    assert bool(jnp.all(y == x))

    # Exercise the rare unaligned (padded) path once for correctness.
    x_odd = jax.random.normal(jax.random.PRNGKey(1), (3, 5, 7), dtype=jnp.float32)
    y_odd = identity(x_odd)
    jax.block_until_ready(y_odd)
    assert y_odd.shape == x_odd.shape
    assert bool(jnp.all(y_odd == x_odd))

    print("KERNEL_OK")
</pallas_src>

<mosaic_0001>
module attributes {stable_mosaic.version = 11 : i64} {
  func.func @_identity_kernel(%arg0: i32, %arg1: memref<16x128xf32, #tpu.memory_space<vmem>>, %arg2: memref<16x128xf32, #tpu.memory_space<vmem>>) attributes {dimension_semantics = [#tpu.dimension_semantics<parallel>], iteration_bounds = array<i64: 1>, scalar_prefetch = 0 : i64, scratch_operands = 0 : i64, tpu.core_type = #tpu.core_type<tc>, window_params = [{transform_indices = @transform_0, window_bounds = array<i64: 16, 128>}, {transform_indices = @transform_1, window_bounds = array<i64: 16, 128>}]} {
    %c0 = arith.constant 0 : index
    %c0_0 = arith.constant 0 : index
    %0 = vector.load %arg1[%c0, %c0_0] : memref<16x128xf32, #tpu.memory_space<vmem>>, vector<16x128xf32>
    %c0_1 = arith.constant 0 : index
    %c0_2 = arith.constant 0 : index
    %1 = vector.load %arg2[%c0_1, %c0_2] : memref<16x128xf32, #tpu.memory_space<vmem>>, vector<16x128xf32>
    tpu.vector_store %arg2[%c0_1, %c0_2], %0 {strides = array<i32>} : memref<16x128xf32, #tpu.memory_space<vmem>>, vector<16x128xf32>,
    return
  }
  func.func @transform_0(%arg0: i32) -> (i32, i32) {
    %c0_i32 = arith.constant 0 : i32
    %c0_i32_0 = arith.constant 0 : i32
    return %arg0, %c0_i32 : i32, i32
  }
  func.func @transform_1(%arg0: i32) -> (i32, i32) {
    %c0_i32 = arith.constant 0 : i32
    %c0_i32_0 = arith.constant 0 : i32
    return %arg0, %c0_i32 : i32, i32
  }
}

</mosaic_0001>

<llo_original>
// kernel: tpu_custom_call.1
$region0: #{tpu_custom_call.1}
  #allocation0 [shape = 'u32[]', space=smem, size = 0x4, offset = 0x4, fixed_abs, tag = 'smem constant byte address 0x4 - core index']
  #allocation1 [shape = 'u32[144,128]{1,0:T(1,128)}', space=vmem, size = 0x12000, scoped, tag = 'internal scratch']
  %s0 = inlined_call_operand.hbm [shape: f32[16,128], index: 0, kind: input, shape index: {}]
  %s1 = inlined_call_operand.hbm [shape: f32[16,128], index: 1, kind: output, shape index: {}]
  %s2 = sld [smem:[#allocation0]]
  $region18: #{tpu_custom_call.1} parent=0
    _
  %s4 = ssub.s32 1, %s2
  %s5 = scalar_select 0, %s4, %s2
  $region1: #{tpu_custom_call.1} parent=0
    #allocation2 [shape = 'u8[8192]{0}', space=vmem, size = 0x2000, scoped, tag = 'input window, operand 0, single buffered']
    #allocation3 [shape = 's32[1]{0}', space=sflag, size = 0x4, scoped, tag = 'scoped memory for tpu_custom_call.1']
    #allocation4 [shape = 's32[1]{0}', space=sflag, size = 0x4, scoped, tag = 'scoped memory for tpu_custom_call.1']
    #allocation5 [shape = 'u8[8192]{0}', space=vmem, size = 0x2000, scoped, tag = 'output window, operand 0, single buffered']
    %6 = vsyncpa [#allocation3], 0
    %7 = vsyncpa [#allocation4], 0
    // Predicated region
    $region2: #{tpu_custom_call.1} parent=1 // pred_check
      _
    $region3: #{tpu_custom_call.1} parent=1 // pred_check_branch
      %9 = sbr.rel (0) target = $region5
    $region4: #{tpu_custom_call.1} parent=1 // pred_region
      %s11 = ssub.s32 256, 256
      %12 = vsyncadd [#allocation3], %s11
      %s13 = sshll.u32 [#allocation2], 4
      %s14 = int_to_ptr.vmem [resolvable:$true] %s13
      %19 = dma.hbm_to_vmem [thread:$0]  %s0, 256, %s14, [#allocation3], 128, 128, 8
    $region5: #{tpu_custom_call.1} parent=1 // pred_fallthru
      _
    // Predicated region
    $region6: #{tpu_custom_call.1} parent=1 // pred_check
      _
    $region7: #{tpu_custom_call.1} parent=1 // pred_check_branch
      %21 = sbr.rel (0) target = $region9
    $region8: #{tpu_custom_call.1} parent=1 // pred_region
      %22 = dma.done [#allocation3], 256
    $region9: #{tpu_custom_call.1} parent=1 // pred_fallthru
      _
    %v23 = vld [vmem:[#allocation2] sm:$0xff]
    %v24 = vld [vmem:[#allocation2 + $0x8] sm:$0xff]
    %25 = vst [vmem:[#allocation5] sm:$0xff] %v23
    %26 = vst [vmem:[#allocation5 + $0x8] sm:$0xff] %v24
    // Predicated region
    $region10: #{tpu_custom_call.1} parent=1 // pred_check
      _
    $region11: #{tpu_custom_call.1} parent=1 // pred_check_branch
      %28 = sbr.rel (0) target = $region13
    $region12: #{tpu_custom_call.1} parent=1 // pred_region
      %s30 = ssub.s32 256, 256
      %31 = vsyncadd [#allocation4], %s30
      %s32 = sshll.u32 [#allocation5], 4
      %s33 = int_to_ptr.vmem [resolvable:$true] %s32
      %38 = dma.vmem_to_hbm [thread:$0]  %s33, 256, %s1, [#allocation4], 128, 128, 8
    $region13: #{tpu_custom_call.1} parent=1 // pred_fallthru
      _
    // Predicated region
    $region14: #{tpu_custom_call.1} parent=1 // pred_check
      _
    $region15: #{tpu_custom_call.1} parent=1 // pred_check_branch
      %40 = sbr.rel (0) target = $region17
    $region16: #{tpu_custom_call.1} parent=1 // pred_region
      %41 = dma.done [#allocation4], 256
    $region17: #{tpu_custom_call.1} parent=1 // pred_fallthru
      _
    %42 = vsyncpa [#allocation3], 1
    %43 = vsyncpa [#allocation4], 1

</llo_original>
